<compile_context>
chip_gen: v5e
topology: v5e:2x2
jax: 0.10.0
libtpu: 0.0.40
codegen_flags: <defaults>
</compile_context>

<pallas_src>
import functools

import jax
import jax.numpy as jnp
from jax.experimental import pallas as pl
from jax.experimental.pallas import tpu as pltpu


def _round_up(x, m):
    return (x + m - 1) // m * m


# ----------------------------------------------------------------------------
# Kernel
# ----------------------------------------------------------------------------
def _poly_linear_kernel(x_ref, w_ref, b_ref, o_ref, *, degree, f_pad,
                        compute_dtype):
    # x_ref : (TILE_B, f_pad)            f32, lanes >= F are zero
    # w_ref : (degree*f_pad, o_pad)      f32 or bf16, power-major row blocks
    # b_ref : (1, o_pad)                 f32, zero beyond O
    # o_ref : (TILE_B, o_pad)            f32
    x = x_ref[...]

    # Power k built incrementally on the VPU (cheap muls, overlap with MXU),
    # accumulated with one MXU dot per power block.  No concat intermediate.
    xk = x
    acc = jnp.dot(xk.astype(compute_dtype), w_ref[0:f_pad, :],
                  preferred_element_type=jnp.float32)
    for k in range(1, degree):
        xk = xk * x                                      # x^(k+1), f32
        acc = acc + jnp.dot(xk.astype(compute_dtype),
                            w_ref[k * f_pad:(k + 1) * f_pad, :],
                            preferred_element_type=jnp.float32)

    o_ref[...] = (acc + b_ref[...]).astype(o_ref.dtype)


# ----------------------------------------------------------------------------
# One-time parameter preparation (hoisted out of the per-call path)
# ----------------------------------------------------------------------------
def prepare_poly_linear_params(weight, bias, *, degree, in_features,
                               use_bf16=False):
    """weight: (O, F*degree) [PyTorch layout]; bias: (O,)."""
    out_features, tot = weight.shape
    assert tot == in_features * degree

    w_dtype = jnp.bfloat16 if use_bf16 else weight.dtype
    o_pad = _round_up(out_features, 128)
    # TODO(synk): on v6e/v7x, if 128 < O <= 256 padding O to 256 fills the
    # 256-wide MXU N dimension for free.

    # Small-F packing: one contiguous K block for all powers.
    pack = in_features < 128
    if pack:
        k_eff = in_features * degree
        f_pad = _round_up(k_eff, 128)
        kernel_degree = 1
        w_full = (jnp.zeros((f_pad, o_pad), w_dtype)
                  .at[:k_eff, :out_features].set(weight.T.astype(w_dtype)))
    else:
        f_pad = _round_up(in_features, 128)
        kernel_degree = degree
        w3 = weight.T.reshape(degree, in_features, out_features).astype(w_dtype)
        w_full = (jnp.zeros((degree, f_pad, o_pad), w_dtype)
                  .at[:, :in_features, :out_features].set(w3)
                  .reshape(degree * f_pad, o_pad))

    b_full = (jnp.zeros((1, o_pad), jnp.float32)
              .at[0, :out_features].set(bias.astype(jnp.float32)))

    return dict(
        w=w_full, b=b_full, degree=degree, kernel_degree=kernel_degree,
        pack=pack, in_features=in_features, out_features=out_features,
        f_pad=f_pad, o_pad=o_pad,
        compute_dtype=jnp.bfloat16 if use_bf16 else jnp.float32,
    )


def _choose_tile_b(batch, max_tile_b):
    b_sub = _round_up(batch, 8)
    # Aim for >=2 grid steps so dimension_semantics=("parallel",) can shard
    # across v7x's two TensorCores (no effect on v5e/v6e).
    tile = min(_round_up(max_tile_b, 8),
               max(8, _round_up(pl.cdiv(b_sub, 2), 8)))
    # Cap batch-padding waste at ~12.5% of the real batch.
    while tile > 8 and (_round_up(b_sub, tile) - b_sub) * 8 > b_sub:
        tile = max(8, _round_up(tile // 2, 8))
    return tile


# ----------------------------------------------------------------------------
# Forward
# ----------------------------------------------------------------------------
def poly_regression_forward(x, params, *, max_tile_b=512,
                            vmem_budget_bytes=48 << 20):
    batch, in_features = x.shape
    assert in_features == params["in_features"]
    degree = params["degree"]
    kernel_degree = params["kernel_degree"]
    f_pad, o_pad = params["f_pad"], params["o_pad"]
    w, b = params["w"], params["b"]
    compute_dtype = params["compute_dtype"]

    if params["pack"]:
        # degree*F is tiny; build the packed poly features in the wrapper so
        # K = round_up(degree*F, 128) instead of degree * 128.
        feats = jnp.concatenate([x ** i for i in range(1, degree + 1)], axis=1)
    else:
        feats = x
    feat_cols = feats.shape[1]

    tile_b = _choose_tile_b(batch, max_tile_b)

    def vmem_bytes(tb):
        w_bytes = w.size * w.dtype.itemsize          # single-buffered
        b_bytes = b.size * 4
        x_bytes = 2 * tb * f_pad * feats.dtype.itemsize
        o_bytes = 2 * tb * o_pad * x.dtype.itemsize
        return w_bytes + b_bytes + x_bytes + o_bytes

    # Shrink tile until the per-step footprint fits the budget (headroom for
    # v7x's 64 MiB physical VMEM and v5e's small scoped default).
    while tile_b > 8 and vmem_bytes(tile_b) > vmem_budget_bytes:
        tile_b = max(8, _round_up(tile_b // 2, 8))

    b_pad = _round_up(_round_up(batch, 8), tile_b)

    # Only materialize a padded copy of the activations when needed.
    if (b_pad, f_pad) != feats.shape:
        feats = (jnp.zeros((b_pad, f_pad), feats.dtype)
                 .at[:batch, :feat_cols].set(feats))

    grid = (b_pad // tile_b,)
    kernel = functools.partial(_poly_linear_kernel, degree=kernel_degree,
                               f_pad=f_pad, compute_dtype=compute_dtype)

    vmem_limit = int(min(max(vmem_bytes(tile_b) * 5 // 4 + (2 << 20),
                             16 << 20), 64 << 20))

    def build(resident_mode):
        return pl.pallas_call(
            kernel,
            out_shape=jax.ShapeDtypeStruct((b_pad, o_pad), x.dtype),
            grid_spec=pltpu.PrefetchScalarGridSpec(
                num_scalar_prefetch=0,
                grid=grid,
                in_specs=[
                    pl.BlockSpec((tile_b, f_pad), lambda i: (i, 0)),
                    # Weight & bias are resident across the grid (constant
                    # index_map); request single buffering to halve VMEM.
                    pl.BlockSpec((kernel_degree * f_pad, o_pad),
                                 lambda i: (0, 0),
                                 pipeline_mode=resident_mode),
                    pl.BlockSpec((1, o_pad), lambda i: (0, 0),
                                 pipeline_mode=resident_mode),
                ],
                out_specs=pl.BlockSpec((tile_b, o_pad), lambda i: (i, 0)),
            ),
            compiler_params=pltpu.CompilerParams(
                dimension_semantics=("parallel",),
                vmem_limit_bytes=vmem_limit),
        )

    try:
        out_pad = build(pl.Buffered(1))(feats, w, b)
    except Exception:
        # Fallback if single-buffering of resident operands is unsupported.
        out_pad = build(None)(feats, w, b)

    return out_pad[:batch, :params["out_features"]]


def poly_regression_reference(x, weight, bias, *, degree):
    poly_x = jnp.concatenate([x ** i for i in range(1, degree + 1)], axis=1)
    return poly_x @ weight.T + bias


if __name__ == "__main__":
    degree = 3
    batch = 8
    in_features = 4
    out_features = 2

    key = jax.random.PRNGKey(0)
    kx, kw, kb = jax.random.split(key, 3)

    x = jax.random.normal(kx, (batch, in_features), dtype=jnp.float32)

    # Deterministic parameter init mimicking nn.Linear (uniform +-1/sqrt(fan_in)).
    fan_in = in_features * degree
    bound = 1.0 / (fan_in ** 0.5)
    weight = jax.random.uniform(
        kw, (out_features, fan_in), minval=-bound, maxval=bound,
        dtype=jnp.float32)
    bias = jax.random.uniform(
        kb, (out_features,), minval=-bound, maxval=bound, dtype=jnp.float32)

    ref = poly_regression_reference(x, weight, bias, degree=degree)

    # f32 path (holds the strict tolerance).
    params_f32 = prepare_poly_linear_params(
        weight, bias, degree=degree, in_features=in_features, use_bf16=False)
    out = jax.block_until_ready(poly_regression_forward(x, params_f32))
    assert out.shape == (batch, out_features)
    assert jnp.allclose(out, ref, atol=1e-5, rtol=1e-5), (out, ref)

    # bf16 MXU path (flag-gated; looser tolerance).
    params_bf16 = prepare_poly_linear_params(
        weight, bias, degree=degree, in_features=in_features, use_bf16=True)
    out_bf16 = jax.block_until_ready(poly_regression_forward(x, params_bf16))
    assert out_bf16.shape == (batch, out_features)
    assert jnp.allclose(out_bf16, ref, atol=5e-2, rtol=5e-2), (out_bf16, ref)

    print("KERNEL_OK")
</pallas_src>

<mosaic_0001>
module attributes {stable_mosaic.version = 11 : i64} {
  func.func @_poly_linear_kernel(%arg0: i32, %arg1: memref<8x128xf32, #tpu.memory_space<vmem>>, %arg2: memref<128x128xf32, #tpu.memory_space<vmem>>, %arg3: memref<1x128xf32, #tpu.memory_space<vmem>>, %arg4: memref<8x128xf32, #tpu.memory_space<vmem>>) attributes {dimension_semantics = [#tpu.dimension_semantics<parallel>], iteration_bounds = array<i64: 1>, scalar_prefetch = 0 : i64, scratch_operands = 0 : i64, tpu.core_type = #tpu.core_type<tc>, window_params = [{transform_indices = @transform_0, window_bounds = array<i64: 8, 128>}, {pipeline_mode = #tpu.pipeline_mode<synchronous>, transform_indices = @transform_1, window_bounds = array<i64: 128, 128>}, {pipeline_mode = #tpu.pipeline_mode<synchronous>, transform_indices = @transform_2, window_bounds = array<i64: 1, 128>}, {transform_indices = @transform_3, window_bounds = array<i64: 8, 128>}]} {
    %c0 = arith.constant 0 : index
    %c0_0 = arith.constant 0 : index
    %0 = vector.load %arg1[%c0, %c0_0] : memref<8x128xf32, #tpu.memory_space<vmem>>, vector<8x128xf32>
    %c0_1 = arith.constant 0 : index
    %c0_2 = arith.constant 0 : index
    %1 = vector.load %arg2[%c0_1, %c0_2] : memref<128x128xf32, #tpu.memory_space<vmem>>, vector<128x128xf32>
    %cst = arith.constant dense<0.000000e+00> : vector<8x128xf32>
    %2 = tpu.matmul %0, %1, %cst {dimension_numbers = #tpu.dot_dimension_numbers<[1], [0], [0], [1], [0, 0, 1, 1], [], []>} : vector<8x128xf32>, vector<128x128xf32>, vector<8x128xf32> -> vector<8x128xf32>
    %c0_3 = arith.constant 0 : index
    %c0_4 = arith.constant 0 : index
    %3 = vector.load %arg3[%c0_3, %c0_4] : memref<1x128xf32, #tpu.memory_space<vmem>>, vector<1x128xf32>
    %4 = vector.broadcast %3 : vector<1x128xf32> to vector<8x128xf32>
    %5 = arith.addf %2, %4 : vector<8x128xf32>
    %c0_5 = arith.constant 0 : index
    %c0_6 = arith.constant 0 : index
    %6 = vector.load %arg4[%c0_5, %c0_6] : memref<8x128xf32, #tpu.memory_space<vmem>>, vector<8x128xf32>
    tpu.vector_store %arg4[%c0_5, %c0_6], %5 {strides = array<i32>} : memref<8x128xf32, #tpu.memory_space<vmem>>, vector<8x128xf32>,
    return
  }
  func.func @transform_0(%arg0: i32) -> (i32, i32) {
    %c0_i32 = arith.constant 0 : i32
    %c0_i32_0 = arith.constant 0 : i32
    return %arg0, %c0_i32 : i32, i32
  }
  func.func @transform_1(%arg0: i32) -> (i32, i32) {
    %c0_i32 = arith.constant 0 : i32
    %c0_i32_0 = arith.constant 0 : i32
    %c0_i32_1 = arith.constant 0 : i32
    return %c0_i32, %c0_i32_0 : i32, i32
  }
  func.func @transform_2(%arg0: i32) -> (i32, i32) {
    %c0_i32 = arith.constant 0 : i32
    %c0_i32_0 = arith.constant 0 : i32
    %c0_i32_1 = arith.constant 0 : i32
    return %c0_i32, %c0_i32_0 : i32, i32
  }
  func.func @transform_3(%arg0: i32) -> (i32, i32) {
    %c0_i32 = arith.constant 0 : i32
    %c0_i32_0 = arith.constant 0 : i32
    return %arg0, %c0_i32 : i32, i32
  }
}

module attributes {stable_mosaic.version = 11 : i64} {
  func.func @_poly_linear_kernel(%arg0: i32, %arg1: memref<8x128xf32, #tpu.memory_space<vmem>>, %arg2: memref<128x128xf32, #tpu.memory_space<vmem>>, %arg3: memref<1x128xf32, #tpu.memory_space<vmem>>, %arg4: memref<8x128xf32, #tpu.memory_space<vmem>>) attributes {dimension_semantics = [#tpu.dimension_semantics<parallel>], iteration_bounds = array<i64: 1>, scalar_prefetch = 0 : i64, scratch_operands = 0 : i64, tpu.core_type = #tpu.core_type<tc>, window_params = [{transform_indices = @transform_0, window_bounds = array<i64: 8, 128>}, {pipeline_mode = #tpu.pipeline_mode<synchronous>, transform_indices = @transform_1, window_bounds = array<i64: 128, 128>}, {pipeline_mode = #tpu.pipeline_mode<synchronous>, transform_indices = @transform_2, window_bounds = array<i64: 1, 128>}, {transform_indices = @transform_3, window_bounds = array<i64: 8, 128>}]} {
    %c0 = arith.constant 0 : index
    %c0_0 = arith.constant 0 : index
    %0 = vector.load %arg1[%c0, %c0_0] : memref<8x128xf32, #tpu.memory_space<vmem>>, vector<8x128xf32>
    %c0_1 = arith.constant 0 : index
    %c0_2 = arith.constant 0 : index
    %1 = vector.load %arg2[%c0_1, %c0_2] : memref<128x128xf32, #tpu.memory_space<vmem>>, vector<128x128xf32>
    %cst = arith.constant dense<0.000000e+00> : vector<8x128xf32>
    %2 = tpu.matmul %0, %1, %cst {dimension_numbers = #tpu.dot_dimension_numbers<[1], [0], [0], [1], [0, 0, 1, 1], [], []>} : vector<8x128xf32>, vector<128x128xf32>, vector<8x128xf32> -> vector<8x128xf32>
    %c0_3 = arith.constant 0 : index
    %c0_4 = arith.constant 0 : index
    %3 = vector.load %arg3[%c0_3, %c0_4] : memref<1x128xf32, #tpu.memory_space<vmem>>, vector<1x128xf32>
    %4 = vector.broadcast %3 : vector<1x128xf32> to vector<8x128xf32>
    %5 = arith.addf %2, %4 : vector<8x128xf32>
    %c0_5 = arith.constant 0 : index
    %c0_6 = arith.constant 0 : index
    %6 = vector.load %arg4[%c0_5, %c0_6] : memref<8x128xf32, #tpu.memory_space<vmem>>, vector<8x128xf32>
    tpu.vector_store %arg4[%c0_5, %c0_6], %5 {strides = array<i32>} : memref<8x128xf32, #tpu.memory_space<vmem>>, vector<8x128xf32>,
    return
  }
  func.func @transform_0(%arg0: i32) -> (i32, i32) {
    %c0_i32 = arith.constant 0 : i32
    %c0_i32_0 = arith.constant 0 : i32
    return %arg0, %c0_i32 : i32, i32
  }
  func.func @transform_1(%arg0: i32) -> (i32, i32) {
    %c0_i32 = arith.constant 0 : i32
    %c0_i32_0 = arith.constant 0 : i32
    %c0_i32_1 = arith.constant 0 : i32
    return %c0_i32, %c0_i32_0 : i32, i32
  }
  func.func @transform_2(%arg0: i32) -> (i32, i32) {
    %c0_i32 = arith.constant 0 : i32
    %c0_i32_0 = arith.constant 0 : i32
    %c0_i32_1 = arith.constant 0 : i32
    return %c0_i32, %c0_i32_0 : i32, i32
  }
  func.func @transform_3(%arg0: i32) -> (i32, i32) {
    %c0_i32 = arith.constant 0 : i32
    %c0_i32_0 = arith.constant 0 : i32
    return %arg0, %c0_i32 : i32, i32
  }
}

</mosaic_0001>

<llo_original>
// kernel: tpu_custom_call.1
$region0: #{tpu_custom_call.1}
  #allocation0 [shape = 'u32[]', space=smem, size = 0x4, offset = 0x4, fixed_abs, tag = 'smem constant byte address 0x4 - core index']
  #allocation1 [shape = 'u32[72,128]{1,0:T(1,128)}', space=vmem, size = 0x9000, scoped, tag = 'internal scratch']
  %s0 = inlined_call_operand.hbm [shape: f32[8,128], index: 0, kind: input, shape index: {}]
  %s1 = inlined_call_operand.hbm [shape: f32[128,128], index: 1, kind: input, shape index: {}]
  %s2 = inlined_call_operand.vmem [shape: f32[1,128], index: 2, kind: input, shape index: {}]
  %s3 = inlined_call_operand.hbm [shape: f32[8,128], index: 3, kind: output, shape index: {}]
  %s4 = sld [smem:[#allocation0]]
  $region30: #{tpu_custom_call.1} parent=0
    _
  %s6 = ssub.s32 1, %s4
  %s7 = scalar_select 0, %s6, %s4
  $region1: #{tpu_custom_call.1} parent=0
    #allocation2 [shape = 'u8[4096]{0}', space=vmem, size = 0x1000, scoped, tag = 'input window, operand 0, single buffered']
    #allocation3 [shape = 's32[1]{0}', space=sflag, size = 0x4, scoped, tag = 'scoped memory for tpu_custom_call.1']
    #allocation4 [shape = 's32[1]{0}', space=sflag, size = 0x4, scoped, tag = 'scoped memory for tpu_custom_call.1']
    #allocation5 [shape = 'u8[65536]{0}', space=vmem, size = 0x10000, scoped, tag = 'input window, operand 1, single buffered']
    #allocation6 [shape = 's32[1]{0}', space=sflag, size = 0x4, scoped, tag = 'scoped memory for tpu_custom_call.1']
    #allocation7 [shape = 'u8[4096]{0}', space=vmem, size = 0x1000, scoped, tag = 'output window, operand 0, single buffered']
    %8 = vsyncpa [#allocation3], 0
    %9 = vsyncpa [#allocation6], 0
    %10 = vsyncpa [#allocation4], 0
    // Predicated region
    $region2: #{tpu_custom_call.1} parent=1 // pred_check
      _
    $region3: #{tpu_custom_call.1} parent=1 // pred_check_branch
      %12 = sbr.rel (0) target = $region5
    $region4: #{tpu_custom_call.1} parent=1 // pred_region
      %14 = vsyncadd [#allocation3], 0
      %s16 = sshll.u32 %s0, 4
      %s17 = int_to_ptr.hbm [resolvable:$true] %s16
      %s18 = sshll.u32 [#allocation2], 4
      %s19 = int_to_ptr.vmem [resolvable:$true] %s18
      %21 = dma.hbm_to_vmem [thread:$0]  %s17, 128, %s19, [#allocation3]
    $region5: #{tpu_custom_call.1} parent=1 // pred_fallthru
      _
    // Predicated region
    $region6: #{tpu_custom_call.1} parent=1 // pred_check
      _
    $region7: #{tpu_custom_call.1} parent=1 // pred_check_branch
      %23 = sbr.rel (0) target = $region9
    $region8: #{tpu_custom_call.1} parent=1 // pred_region
      %25 = vsyncadd [#allocation6], 0
      %s26 = sshll.u32 %s1, 4
      %s27 = int_to_ptr.hbm [resolvable:$true] %s26
      %s28 = sshll.u32 [#allocation5], 4
      %s29 = int_to_ptr.vmem [resolvable:$true] %s28
      %34 = dma.hbm_to_vmem [thread:$0]  %s27, 2048, %s29, [#allocation6], 128, 128, 8
    $region9: #{tpu_custom_call.1} parent=1 // pred_fallthru
      _
    // Predicated region
    $region10: #{tpu_custom_call.1} parent=1 // pred_check
      _
    $region11: #{tpu_custom_call.1} parent=1 // pred_check_branch
      %36 = sbr.rel (0) target = $region13
    $region12: #{tpu_custom_call.1} parent=1 // pred_region
      _
    $region13: #{tpu_custom_call.1} parent=1 // pred_fallthru
      _
    // Predicated region
    $region14: #{tpu_custom_call.1} parent=1 // pred_check
      _
    $region15: #{tpu_custom_call.1} parent=1 // pred_check_branch
      %38 = sbr.rel (0) target = $region17
    $region16: #{tpu_custom_call.1} parent=1 // pred_region
      %40 = dma.done [#allocation3], 128
    $region17: #{tpu_custom_call.1} parent=1 // pred_fallthru
      _
    // Predicated region
    $region18: #{tpu_custom_call.1} parent=1 // pred_check
      _
    $region19: #{tpu_custom_call.1} parent=1 // pred_check_branch
      %42 = sbr.rel (0) target = $region21
    $region20: #{tpu_custom_call.1} parent=1 // pred_region
      %44 = dma.done [#allocation6], 2048
    $region21: #{tpu_custom_call.1} parent=1 // pred_fallthru
      _
    %v45 = vld [vmem:[#allocation2] sm:$0xff]
    %v46 = vld [vmem:[#allocation5] sm:$0xff]
    %v47 = vld [vmem:[#allocation5 + $0x8] sm:$0xff]
    %v48 = vld [vmem:[#allocation5 + $0x10] sm:$0xff]
    %v49 = vld [vmem:[#allocation5 + $0x18] sm:$0xff]
    %v50 = vld [vmem:[#allocation5 + $0x20] sm:$0xff]
    %v51 = vld [vmem:[#allocation5 + $0x28] sm:$0xff]
    %v52 = vld [vmem:[#allocation5 + $0x30] sm:$0xff]
    %v53 = vld [vmem:[#allocation5 + $0x38] sm:$0xff]
    %v54 = vld [vmem:[#allocation5 + $0x40] sm:$0xff]
    %v55 = vld [vmem:[#allocation5 + $0x48] sm:$0xff]
    %v56 = vld [vmem:[#allocation5 + $0x50] sm:$0xff]
    %v57 = vld [vmem:[#allocation5 + $0x58] sm:$0xff]
    %v58 = vld [vmem:[#allocation5 + $0x60] sm:$0xff]
    %v59 = vld [vmem:[#allocation5 + $0x68] sm:$0xff]
    %v60 = vld [vmem:[#allocation5 + $0x70] sm:$0xff]
    %v61 = vld [vmem:[#allocation5 + $0x78] sm:$0xff]
    %v62 = vld [vmem:[%s2] sm:$0x1]
    %v64 = vperm.slane %v62, 0
    %66 = vmatpush.msra.mxu0 %v61
    %67 = vmatpush.msra.mxu0 %v60
    %68 = vmatpush.msra.mxu0 %v59
    %69 = vmatpush.msra.mxu0 %v58
    %70 = vmatpush.msra.mxu0 %v57
    %71 = vmatpush.msra.mxu0 %v56
    %72 = vmatpush.msra.mxu0 %v55
    %73 = vmatpush.msra.mxu0 %v54
    %74 = vmatpush.msra.mxu0 %v53
    %75 = vmatpush.msra.mxu0 %v52
    %76 = vmatpush.msra.mxu0 %v51
    %77 = vmatpush.msra.mxu0 %v50
    %78 = vmatpush.msra.mxu0 %v49
    %79 = vmatpush.msra.mxu0 %v48
    %80 = vmatpush.msra.mxu0 %v47
    %81 = vmatpush.msra.mxu0 %v46
    %82 = vmatmul.f32.gmra.mxu0 %v45
    %v83 = vpop.f32.mrf.mxu0
    %v84 = vadd.f32 %v64, %v83
    %85 = vdwg.mxu0
    %86 = vst [vmem:[#allocation7] sm:$0xff] %v84
    // Predicated region
    $region22: #{tpu_custom_call.1} parent=1 // pred_check
      _
    $region23: #{tpu_custom_call.1} parent=1 // pred_check_branch
      %88 = sbr.rel (0) target = $region25
    $region24: #{tpu_custom_call.1} parent=1 // pred_region
      %90 = vsyncadd [#allocation4], 0
      %s92 = sshll.u32 [#allocation7], 4
      %s93 = int_to_ptr.vmem [resolvable:$true] %s92
      %s94 = sshll.u32 %s3, 4
      %s95 = int_to_ptr.hbm [resolvable:$true] %s94
      %97 = dma.vmem_to_hbm [thread:$0]  %s93, 128, %s95, [#allocation4]
    $region25: #{tpu_custom_call.1} parent=1 // pred_fallthru
      _
    // Predicated region
    $region26: #{tpu_custom_call.1} parent=1 // pred_check
      _
    $region27: #{tpu_custom_call.1} parent=1 // pred_check_branch
      %99 = sbr.rel (0) target = $region29
    $region28: #{tpu_custom_call.1} parent=1 // pred_region
      %101 = dma.done [#allocation4], 128
    $region29: #{tpu_custom_call.1} parent=1 // pred_fallthru
      _
    %102 = vsyncpa [#allocation3], 1
    %103 = vsyncpa [#allocation6], 1
    %104 = vsyncpa [#allocation4], 1

// kernel: tpu_custom_call.1
$region0: #{tpu_custom_call.1}
  #allocation0 [shape = 'u32[]', space=smem, size = 0x4, offset = 0x4, fixed_abs, tag = 'smem constant byte address 0x4 - core index']
  #allocation1 [shape = 'u32[72,128]{1,0:T(1,128)}', space=vmem, size = 0x9000, scoped, tag = 'internal scratch']
  %s0 = inlined_call_operand.hbm [shape: f32[8,128], index: 0, kind: input, shape index: {}]
  %s1 = inlined_call_operand.hbm [shape: f32[128,128], index: 1, kind: input, shape index: {}]
  %s2 = inlined_call_operand.vmem [shape: f32[1,128], index: 2, kind: input, shape index: {}]
  %s3 = inlined_call_operand.hbm [shape: f32[8,128], index: 3, kind: output, shape index: {}]
  %s4 = sld [smem:[#allocation0]]
  $region30: #{tpu_custom_call.1} parent=0
    _
  %s6 = ssub.s32 1, %s4
  %s7 = scalar_select 0, %s6, %s4
  $region1: #{tpu_custom_call.1} parent=0
    #allocation2 [shape = 'u8[4096]{0}', space=vmem, size = 0x1000, scoped, tag = 'input window, operand 0, single buffered']
    #allocation3 [shape = 's32[1]{0}', space=sflag, size = 0x4, scoped, tag = 'scoped memory for tpu_custom_call.1']
    #allocation4 [shape = 's32[1]{0}', space=sflag, size = 0x4, scoped, tag = 'scoped memory for tpu_custom_call.1']
    #allocation5 [shape = 'u8[65536]{0}', space=vmem, size = 0x10000, scoped, tag = 'input window, operand 1, single buffered']
    #allocation6 [shape = 's32[1]{0}', space=sflag, size = 0x4, scoped, tag = 'scoped memory for tpu_custom_call.1']
    #allocation7 [shape = 'u8[4096]{0}', space=vmem, size = 0x1000, scoped, tag = 'output window, operand 0, single buffered']
    %8 = vsyncpa [#allocation3], 0
    %9 = vsyncpa [#allocation6], 0
    %10 = vsyncpa [#allocation4], 0
    // Predicated region
    $region2: #{tpu_custom_call.1} parent=1 // pred_check
      _
    $region3: #{tpu_custom_call.1} parent=1 // pred_check_branch
      %12 = sbr.rel (0) target = $region5
    $region4: #{tpu_custom_call.1} parent=1 // pred_region
      %14 = vsyncadd [#allocation3], 0
      %s16 = sshll.u32 %s0, 4
      %s17 = int_to_ptr.hbm [resolvable:$true] %s16
      %s18 = sshll.u32 [#allocation2], 4
      %s19 = int_to_ptr.vmem [resolvable:$true] %s18
      %21 = dma.hbm_to_vmem [thread:$0]  %s17, 128, %s19, [#allocation3]
    $region5: #{tpu_custom_call.1} parent=1 // pred_fallthru
      _
    // Predicated region
    $region6: #{tpu_custom_call.1} parent=1 // pred_check
      _
    $region7: #{tpu_custom_call.1} parent=1 // pred_check_branch
      %23 = sbr.rel (0) target = $region9
    $region8: #{tpu_custom_call.1} parent=1 // pred_region
      %25 = vsyncadd [#allocation6], 0
      %s26 = sshll.u32 %s1, 4
      %s27 = int_to_ptr.hbm [resolvable:$true] %s26
      %s28 = sshll.u32 [#allocation5], 4
      %s29 = int_to_ptr.vmem [resolvable:$true] %s28
      %34 = dma.hbm_to_vmem [thread:$0]  %s27, 2048, %s29, [#allocation6], 128, 128, 8
    $region9: #{tpu_custom_call.1} parent=1 // pred_fallthru
      _
    // Predicated region
    $region10: #{tpu_custom_call.1} parent=1 // pred_check
      _
    $region11: #{tpu_custom_call.1} parent=1 // pred_check_branch
      %36 = sbr.rel (0) target = $region13
    $region12: #{tpu_custom_call.1} parent=1 // pred_region
      _
    $region13: #{tpu_custom_call.1} parent=1 // pred_fallthru
      _
    // Predicated region
    $region14: #{tpu_custom_call.1} parent=1 // pred_check
      _
    $region15: #{tpu_custom_call.1} parent=1 // pred_check_branch
      %38 = sbr.rel (0) target = $region17
    $region16: #{tpu_custom_call.1} parent=1 // pred_region
      %40 = dma.done [#allocation3], 128
    $region17: #{tpu_custom_call.1} parent=1 // pred_fallthru
      _
    // Predicated region
    $region18: #{tpu_custom_call.1} parent=1 // pred_check
      _
    $region19: #{tpu_custom_call.1} parent=1 // pred_check_branch
      %42 = sbr.rel (0) target = $region21
    $region20: #{tpu_custom_call.1} parent=1 // pred_region
      %44 = dma.done [#allocation6], 2048
    $region21: #{tpu_custom_call.1} parent=1 // pred_fallthru
      _
    %v45 = vld [vmem:[#allocation2] sm:$0xff]
    %v46 = vld [vmem:[#allocation5] sm:$0xff]
    %v47 = vld [vmem:[#allocation5 + $0x8] sm:$0xff]
    %v48 = vld [vmem:[#allocation5 + $0x10] sm:$0xff]
    %v49 = vld [vmem:[#allocation5 + $0x18] sm:$0xff]
    %v50 = vld [vmem:[#allocation5 + $0x20] sm:$0xff]
    %v51 = vld [vmem:[#allocation5 + $0x28] sm:$0xff]
    %v52 = vld [vmem:[#allocation5 + $0x30] sm:$0xff]
    %v53 = vld [vmem:[#allocation5 + $0x38] sm:$0xff]
    %v54 = vld [vmem:[#allocation5 + $0x40] sm:$0xff]
    %v55 = vld [vmem:[#allocation5 + $0x48] sm:$0xff]
    %v56 = vld [vmem:[#allocation5 + $0x50] sm:$0xff]
    %v57 = vld [vmem:[#allocation5 + $0x58] sm:$0xff]
    %v58 = vld [vmem:[#allocation5 + $0x60] sm:$0xff]
    %v59 = vld [vmem:[#allocation5 + $0x68] sm:$0xff]
    %v60 = vld [vmem:[#allocation5 + $0x70] sm:$0xff]
    %v61 = vld [vmem:[#allocation5 + $0x78] sm:$0xff]
    %v62 = vld [vmem:[%s2] sm:$0x1]
    %v64 = vperm.slane %v62, 0
    %66 = vmatpush.msra.mxu0 %v61
    %67 = vmatpush.msra.mxu0 %v60
    %68 = vmatpush.msra.mxu0 %v59
    %69 = vmatpush.msra.mxu0 %v58
    %70 = vmatpush.msra.mxu0 %v57
    %71 = vmatpush.msra.mxu0 %v56
    %72 = vmatpush.msra.mxu0 %v55
    %73 = vmatpush.msra.mxu0 %v54
    %74 = vmatpush.msra.mxu0 %v53
    %75 = vmatpush.msra.mxu0 %v52
    %76 = vmatpush.msra.mxu0 %v51
    %77 = vmatpush.msra.mxu0 %v50
    %78 = vmatpush.msra.mxu0 %v49
    %79 = vmatpush.msra.mxu0 %v48
    %80 = vmatpush.msra.mxu0 %v47
    %81 = vmatpush.msra.mxu0 %v46
    %82 = vmatmul.f32.gmra.mxu0 %v45
    %v83 = vpop.f32.mrf.mxu0
    %v84 = vadd.f32 %v64, %v83
    %85 = vdwg.mxu0
    %86 = vst [vmem:[#allocation7] sm:$0xff] %v84
    // Predicated region
    $region22: #{tpu_custom_call.1} parent=1 // pred_check
      _
    $region23: #{tpu_custom_call.1} parent=1 // pred_check_branch
      %88 = sbr.rel (0) target = $region25
    $region24: #{tpu_custom_call.1} parent=1 // pred_region
      %90 = vsyncadd [#allocation4], 0
      %s92 = sshll.u32 [#allocation7], 4
      %s93 = int_to_ptr.vmem [resolvable:$true] %s92
      %s94 = sshll.u32 %s3, 4
      %s95 = int_to_ptr.hbm [resolvable:$true] %s94
      %97 = dma.vmem_to_hbm [thread:$0]  %s93, 128, %s95, [#allocation4]
    $region25: #{tpu_custom_call.1} parent=1 // pred_fallthru
      _
    // Predicated region
    $region26: #{tpu_custom_call.1} parent=1 // pred_check
      _
    $region27: #{tpu_custom_call.1} parent=1 // pred_check_branch
      %99 = sbr.rel (0) target = $region29
    $region28: #{tpu_custom_call.1} parent=1 // pred_region
      %101 = dma.done [#allocation4], 128
    $region29: #{tpu_custom_call.1} parent=1 // pred_fallthru
      _
    %102 = vsyncpa [#allocation3], 1
    %103 = vsyncpa [#allocation6], 1
    %104 = vsyncpa [#allocation4], 1

</llo_original>
